<compile_context>
chip_gen: v7x
topology: tpu7x:2x2x1
jax: 0.10.0
libtpu: 0.0.40
codegen_flags: <defaults>
</compile_context>

<pallas_src>
import jax
import jax.numpy as jnp
from jax.experimental import pallas as pl
from jax.experimental.pallas import tpu as pltpu


def _round_up(x, m):
    return (x + m - 1) // m * m


def attention_kernel(q_ref, k_ref, kp_ref, w1_ref, w2_ref, bh_ref,
                     vt_ref, bv_ref, out_ref):
    # q_ref : [TM, H]    query rows (unpadded lanes)
    # k_ref : [TM, 2H]   keys rows matching the query tile (W2 term)
    # kp_ref: [BP, KP]   keys zero-padded (rows=score cols, lanes=2H) -> ctx RHS
    # w1_ref: [H,  HP]   W1^T, lane-padded
    # w2_ref: [2H, HP]   W2^T, lane-padded
    # bh_ref: [1,  HP]   b1 + b2, lane-padded
    # vt_ref: [HP, BP]   V^T, padded
    # bv_ref: [1,  BP]   bV, padded cols = -1e30 (softmax mask)
    # out_ref:[TM, BP+KP] fused output: attn | context

    # hidden = tanh(q @ W1^T + k @ W2^T + bh)                (MXU + VPU + EUP)
    h = jnp.tanh(
        jnp.dot(q_ref[...], w1_ref[...], preferred_element_type=jnp.float32)
        + jnp.dot(k_ref[...], w2_ref[...], preferred_element_type=jnp.float32)
        + bh_ref[...])                                        # [TM, HP]

    # scores = hidden @ V^T + bV  (padded cols -> -1e30)      (MXU + VPU)
    scores = (jnp.dot(h, vt_ref[...], preferred_element_type=jnp.float32)
              + bv_ref[...])                                  # [TM, BP]

    # numerically stable softmax over the (padded) lane dim   (XLU/EUP/VPU)
    m = jnp.max(scores, axis=-1, keepdims=True)
    e = jnp.exp(scores - m)                                   # padded cols -> 0
    # approx=False keeps the 1e-5 attn tolerance; approx=True is the free-EUP
    # variant if tolerance is relaxed.
    attn = e * pl.reciprocal(jnp.sum(e, axis=-1, keepdims=True), approx=False)

    # context = attn @ keys_pad  (padded keys rows are zero)  (MXU)
    ctx = jnp.dot(attn, kp_ref[...], preferred_element_type=jnp.float32)

    bp = attn.shape[-1]
    out_ref[:, :bp] = attn        # lanes [0, BP)     aligned, unmasked store
    out_ref[:, bp:] = ctx         # lanes [BP, BP+KP) aligned, unmasked store


def _attention_forward(query, keys, packed):
    """Jitted forward: (context [B,2H], attn [B,B])."""
    B, H = query.shape
    HP = _round_up(H, 128)
    BP = _round_up(B, 128)
    KP = _round_up(2 * H, 128)

    # Row (sublane) tiling.  Split into >=2 steps when possible so the
    # "parallel" grid axis can be sharded across both v7x TensorCores.
    BR0 = _round_up(B, 8)
    if BR0 >= 16:
        TM = min(512, max(8, _round_up(BR0 // 2, 8)))
    else:
        TM = BR0
    BR = _round_up(BR0, TM)
    grid = (BR // TM,)

    # Layout plumbing (fused by jit; no standalone eager dispatches).
    q_rows = jnp.pad(query, ((0, BR - B), (0, 0)))            # [BR, H]
    k_rows = jnp.pad(keys, ((0, BR - B), (0, 0)))             # [BR, 2H]
    kp = jnp.pad(keys, ((0, BP - B), (0, KP - 2 * H)))        # [BP, KP]

    def resident(shape):
        # Weights / padded keys stay in VMEM across all grid steps.
        return pl.BlockSpec(shape, lambda i: (0, 0))

    out = pl.pallas_call(
        attention_kernel,
        out_shape=jax.ShapeDtypeStruct((BR, BP + KP), jnp.float32),
        grid_spec=pltpu.PrefetchScalarGridSpec(
            num_scalar_prefetch=0,
            grid=grid,
            in_specs=[
                pl.BlockSpec((TM, H), lambda i: (i, 0)),      # query rows
                pl.BlockSpec((TM, 2 * H), lambda i: (i, 0)),  # keys rows (W2)
                resident((BP, KP)),                           # keys (ctx RHS)
                resident((H, HP)),                            # W1^T
                resident((2 * H, HP)),                        # W2^T
                resident((1, HP)),                            # b1 + b2
                resident((HP, BP)),                           # V^T
                resident((1, BP)),                            # bV (+ pad mask)
            ],
            out_specs=pl.BlockSpec((TM, BP + KP), lambda i: (i, 0)),
        ),
        compiler_params=pltpu.CompilerParams(
            dimension_semantics=("parallel",)),
    )(q_rows, k_rows, kp, packed["W1t"], packed["W2t"], packed["bh"],
      packed["Vt"], packed["bV"])

    attn = out[:B, :B]
    ctx = out[:B, BP:BP + 2 * H]
    return ctx, attn


attention_forward = jax.jit(_attention_forward)


def init_params(key, hidden_size, batch_size):
    """Matches nn.Linear default init: U(-1/sqrt(in_f), 1/sqrt(in_f))."""
    ks = jax.random.split(key, 6)

    def linear(kw, kb, in_f, out_f):
        bound = 1.0 / float(jnp.sqrt(in_f))
        W = jax.random.uniform(kw, (out_f, in_f), jnp.float32, -bound, bound)
        b = jax.random.uniform(kb, (out_f,), jnp.float32, -bound, bound)
        return W, b

    W1, b1 = linear(ks[0], ks[1], hidden_size, hidden_size)      # Linear(H, H)
    W2, b2 = linear(ks[2], ks[3], 2 * hidden_size, hidden_size)  # Linear(2H, H)
    V, bV = linear(ks[4], ks[5], hidden_size, batch_size)        # Linear(H, B)
    return dict(W1=W1, b1=b1, W2=W2, b2=b2, V=V, bV=bV)


def pack_params(params, hidden_size, batch_size):
    """One-time lane-padding (to 128) of the transposed weights + biases."""
    H, B = hidden_size, batch_size
    HP = _round_up(H, 128)
    BP = _round_up(B, 128)

    W1t = jnp.zeros((H, HP), jnp.float32).at[:, :H].set(params["W1"].T)
    W2t = jnp.zeros((2 * H, HP), jnp.float32).at[:, :H].set(params["W2"].T)
    bh = jnp.zeros((1, HP), jnp.float32).at[0, :H].set(
        params["b1"] + params["b2"])
    Vt = jnp.zeros((HP, BP), jnp.float32).at[:H, :B].set(params["V"].T)
    # Padded score columns get a huge negative bias so exp() underflows to 0:
    # softmax over the full 128-lane row == softmax over the real B columns.
    bV = jnp.full((1, BP), -1e30, jnp.float32).at[0, :B].set(params["bV"])
    return dict(W1t=W1t, W2t=W2t, bh=bh, Vt=Vt, bV=bV)


def reference_forward(query, keys, params):
    h = jnp.tanh(query @ params["W1"].T + params["b1"]
                 + keys @ params["W2"].T + params["b2"])
    scores = h @ params["V"].T + params["bV"]
    attn = jax.nn.softmax(scores, axis=-1)
    ctx = attn @ keys
    return ctx, attn


if __name__ == "__main__":
    hidden_size = 32
    batch_size = 8   # query/keys rows == V's output features (torch.mm semantics)

    key = jax.random.PRNGKey(0)
    k_q, k_k, k_p = jax.random.split(key, 3)
    query = jax.random.normal(k_q, (batch_size, hidden_size), jnp.float32)
    keys = jax.random.normal(k_k, (batch_size, hidden_size * 2), jnp.float32)

    params = init_params(k_p, hidden_size, batch_size)
    packed = pack_params(params, hidden_size, batch_size)

    ctx, attn = attention_forward(query, keys, packed)
    jax.block_until_ready((ctx, attn))

    ref_ctx, ref_attn = reference_forward(query, keys, params)
    assert ctx.shape == (batch_size, 2 * hidden_size)
    assert attn.shape == (batch_size, batch_size)
    assert jnp.allclose(ctx, ref_ctx, atol=1e-4, rtol=1e-4), float(
        jnp.max(jnp.abs(ctx - ref_ctx)))
    assert jnp.allclose(attn, ref_attn, atol=1e-5, rtol=1e-5), float(
        jnp.max(jnp.abs(attn - ref_attn)))

    print("KERNEL_OK")
</pallas_src>

<mosaic_0001>
module attributes {stable_mosaic.version = 11 : i64} {
  func.func @attention_kernel(%arg0: i32, %arg1: memref<8x32xf32, #tpu.memory_space<vmem>>, %arg2: memref<8x64xf32, #tpu.memory_space<vmem>>, %arg3: memref<128x128xf32, #tpu.memory_space<vmem>>, %arg4: memref<32x128xf32, #tpu.memory_space<vmem>>, %arg5: memref<64x128xf32, #tpu.memory_space<vmem>>, %arg6: memref<1x128xf32, #tpu.memory_space<vmem>>, %arg7: memref<128x128xf32, #tpu.memory_space<vmem>>, %arg8: memref<1x128xf32, #tpu.memory_space<vmem>>, %arg9: memref<8x256xf32, #tpu.memory_space<vmem>>) attributes {dimension_semantics = [#tpu.dimension_semantics<parallel>], iteration_bounds = array<i64: 1>, scalar_prefetch = 0 : i64, scratch_operands = 0 : i64, tpu.core_type = #tpu.core_type<tc>, window_params = [{transform_indices = @transform_0, window_bounds = array<i64: 8, 32>}, {transform_indices = @transform_1, window_bounds = array<i64: 8, 64>}, {pipeline_mode = #tpu.pipeline_mode<synchronous>, transform_indices = @transform_2, window_bounds = array<i64: 128, 128>}, {pipeline_mode = #tpu.pipeline_mode<synchronous>, transform_indices = @transform_3, window_bounds = array<i64: 32, 128>}, {pipeline_mode = #tpu.pipeline_mode<synchronous>, transform_indices = @transform_4, window_bounds = array<i64: 64, 128>}, {pipeline_mode = #tpu.pipeline_mode<synchronous>, transform_indices = @transform_5, window_bounds = array<i64: 1, 128>}, {pipeline_mode = #tpu.pipeline_mode<synchronous>, transform_indices = @transform_6, window_bounds = array<i64: 128, 128>}, {pipeline_mode = #tpu.pipeline_mode<synchronous>, transform_indices = @transform_7, window_bounds = array<i64: 1, 128>}, {transform_indices = @transform_8, window_bounds = array<i64: 8, 256>}]} {
    %c0 = arith.constant 0 : index
    %c0_0 = arith.constant 0 : index
    %0 = vector.load %arg1[%c0, %c0_0] : memref<8x32xf32, #tpu.memory_space<vmem>>, vector<8x32xf32>
    %c0_1 = arith.constant 0 : index
    %c0_2 = arith.constant 0 : index
    %1 = vector.load %arg4[%c0_1, %c0_2] : memref<32x128xf32, #tpu.memory_space<vmem>>, vector<32x128xf32>
    %cst = arith.constant dense<0.000000e+00> : vector<8x128xf32>
    %2 = tpu.matmul %0, %1, %cst {dimension_numbers = #tpu.dot_dimension_numbers<[1], [0], [0], [1], [0, 0, 1, 1], [], []>} : vector<8x32xf32>, vector<32x128xf32>, vector<8x128xf32> -> vector<8x128xf32>
    %c0_3 = arith.constant 0 : index
    %c0_4 = arith.constant 0 : index
    %3 = vector.load %arg2[%c0_3, %c0_4] : memref<8x64xf32, #tpu.memory_space<vmem>>, vector<8x64xf32>
    %c0_5 = arith.constant 0 : index
    %c0_6 = arith.constant 0 : index
    %4 = vector.load %arg5[%c0_5, %c0_6] : memref<64x128xf32, #tpu.memory_space<vmem>>, vector<64x128xf32>
    %cst_7 = arith.constant dense<0.000000e+00> : vector<8x128xf32>
    %5 = tpu.matmul %3, %4, %cst_7 {dimension_numbers = #tpu.dot_dimension_numbers<[1], [0], [0], [1], [0, 0, 1, 1], [], []>} : vector<8x64xf32>, vector<64x128xf32>, vector<8x128xf32> -> vector<8x128xf32>
    %6 = arith.addf %2, %5 : vector<8x128xf32>
    %c0_8 = arith.constant 0 : index
    %c0_9 = arith.constant 0 : index
    %7 = vector.load %arg6[%c0_8, %c0_9] : memref<1x128xf32, #tpu.memory_space<vmem>>, vector<1x128xf32>
    %8 = vector.broadcast %7 : vector<1x128xf32> to vector<8x128xf32>
    %9 = arith.addf %6, %8 : vector<8x128xf32>
    %10 = math.tanh %9 : vector<8x128xf32>
    %c0_10 = arith.constant 0 : index
    %c0_11 = arith.constant 0 : index
    %11 = vector.load %arg7[%c0_10, %c0_11] : memref<128x128xf32, #tpu.memory_space<vmem>>, vector<128x128xf32>
    %cst_12 = arith.constant dense<0.000000e+00> : vector<8x128xf32>
    %12 = tpu.matmul %10, %11, %cst_12 {dimension_numbers = #tpu.dot_dimension_numbers<[1], [0], [0], [1], [0, 0, 1, 1], [], []>} : vector<8x128xf32>, vector<128x128xf32>, vector<8x128xf32> -> vector<8x128xf32>
    %c0_13 = arith.constant 0 : index
    %c0_14 = arith.constant 0 : index
    %13 = vector.load %arg8[%c0_13, %c0_14] : memref<1x128xf32, #tpu.memory_space<vmem>>, vector<1x128xf32>
    %14 = vector.broadcast %13 : vector<1x128xf32> to vector<8x128xf32>
    %15 = arith.addf %12, %14 : vector<8x128xf32>
    %cst_15 = arith.constant dense<0xFF800000> : vector<8xf32>
    %16 = vector.multi_reduction <maximumf>, %15, %cst_15 [1] : vector<8x128xf32> to vector<8xf32>
    %17 = vector.shape_cast %16 : vector<8xf32> to vector<8x1xf32>
    %18 = vector.broadcast %17 : vector<8x1xf32> to vector<8x128xf32>
    %19 = arith.subf %15, %18 : vector<8x128xf32>
    %20 = math.exp %19 : vector<8x128xf32>
    %cst_16 = arith.constant dense<0.000000e+00> : vector<8xf32>
    %21 = vector.multi_reduction <add>, %20, %cst_16 [1] : vector<8x128xf32> to vector<8xf32>
    %22 = vector.shape_cast %21 : vector<8xf32> to vector<8x1xf32>
    %23 = tpu.reciprocal %22 : vector<8x1xf32> -> vector<8x1xf32>
    %24 = vector.broadcast %23 : vector<8x1xf32> to vector<8x128xf32>
    %25 = arith.mulf %20, %24 : vector<8x128xf32>
    %c0_17 = arith.constant 0 : index
    %c0_18 = arith.constant 0 : index
    %26 = vector.load %arg3[%c0_17, %c0_18] : memref<128x128xf32, #tpu.memory_space<vmem>>, vector<128x128xf32>
    %cst_19 = arith.constant dense<0.000000e+00> : vector<8x128xf32>
    %27 = tpu.matmul %25, %26, %cst_19 {dimension_numbers = #tpu.dot_dimension_numbers<[1], [0], [0], [1], [0, 0, 1, 1], [], []>} : vector<8x128xf32>, vector<128x128xf32>, vector<8x128xf32> -> vector<8x128xf32>
    %c0_20 = arith.constant 0 : index
    %c0_21 = arith.constant 0 : index
    %28 = vector.load %arg9[%c0_20, %c0_21] : memref<8x256xf32, #tpu.memory_space<vmem>>, vector<8x128xf32>
    tpu.vector_store %arg9[%c0_20, %c0_21], %25 {strides = array<i32>} : memref<8x256xf32, #tpu.memory_space<vmem>>, vector<8x128xf32>,
    %c0_22 = arith.constant 0 : index
    %c128 = arith.constant 128 : index
    %29 = vector.load %arg9[%c0_22, %c128] : memref<8x256xf32, #tpu.memory_space<vmem>>, vector<8x128xf32>
    tpu.vector_store %arg9[%c0_22, %c128], %27 {strides = array<i32>} : memref<8x256xf32, #tpu.memory_space<vmem>>, vector<8x128xf32>,
    return
  }
  func.func @transform_0(%arg0: i32) -> (i32, i32) {
    %c0_i32 = arith.constant 0 : i32
    %c0_i32_0 = arith.constant 0 : i32
    return %arg0, %c0_i32 : i32, i32
  }
  func.func @transform_1(%arg0: i32) -> (i32, i32) {
    %c0_i32 = arith.constant 0 : i32
    %c0_i32_0 = arith.constant 0 : i32
    return %arg0, %c0_i32 : i32, i32
  }
  func.func @transform_2(%arg0: i32) -> (i32, i32) {
    %c0_i32 = arith.constant 0 : i32
    %c0_i32_0 = arith.constant 0 : i32
    %c0_i32_1 = arith.constant 0 : i32
    return %c0_i32, %c0_i32_0 : i32, i32
  }
  func.func @transform_3(%arg0: i32) -> (i32, i32) {
    %c0_i32 = arith.constant 0 : i32
    %c0_i32_0 = arith.constant 0 : i32
    %c0_i32_1 = arith.constant 0 : i32
    return %c0_i32, %c0_i32_0 : i32, i32
  }
  func.func @transform_4(%arg0: i32) -> (i32, i32) {
    %c0_i32 = arith.constant 0 : i32
    %c0_i32_0 = arith.constant 0 : i32
    %c0_i32_1 = arith.constant 0 : i32
    return %c0_i32, %c0_i32_0 : i32, i32
  }
  func.func @transform_5(%arg0: i32) -> (i32, i32) {
    %c0_i32 = arith.constant 0 : i32
    %c0_i32_0 = arith.constant 0 : i32
    %c0_i32_1 = arith.constant 0 : i32
    return %c0_i32, %c0_i32_0 : i32, i32
  }
  func.func @transform_6(%arg0: i32) -> (i32, i32) {
    %c0_i32 = arith.constant 0 : i32
    %c0_i32_0 = arith.constant 0 : i32
    %c0_i32_1 = arith.constant 0 : i32
    return %c0_i32, %c0_i32_0 : i32, i32
  }
  func.func @transform_7(%arg0: i32) -> (i32, i32) {
    %c0_i32 = arith.constant 0 : i32
    %c0_i32_0 = arith.constant 0 : i32
    %c0_i32_1 = arith.constant 0 : i32
    return %c0_i32, %c0_i32_0 : i32, i32
  }
  func.func @transform_8(%arg0: i32) -> (i32, i32) {
    %c0_i32 = arith.constant 0 : i32
    %c0_i32_0 = arith.constant 0 : i32
    return %arg0, %c0_i32 : i32, i32
  }
}

</mosaic_0001>

<llo_original>
// kernel: _attention_forward.1
$region0: #{_attention_forward.1}
  #allocation0 [shape = 'u32[]', space=smem, size = 0x4, offset = 0x4, fixed_abs, tag = 'smem constant byte address 0x4 - core index']
  #allocation1 [shape = 'u32[144,128]{1,0:T(1,128)}', space=vmem, size = 0x12000, scoped, tag = 'internal scratch']
  %s0 = inlined_call_operand.vmem [shape: f32[8,32], index: 0, kind: input, shape index: {}]
  %s1 = inlined_call_operand.vmem [shape: f32[8,64], index: 1, kind: input, shape index: {}]
  %s2 = inlined_call_operand.vmem [shape: f32[128,128], index: 2, kind: input, shape index: {}]
  %s3 = inlined_call_operand.hbm [shape: f32[32,128], index: 3, kind: input, shape index: {}]
  %s4 = inlined_call_operand.hbm [shape: f32[64,128], index: 4, kind: input, shape index: {}]
  %s5 = inlined_call_operand.vmem [shape: f32[1,128], index: 5, kind: input, shape index: {}]
  %s6 = inlined_call_operand.vmem [shape: f32[128,128], index: 6, kind: input, shape index: {}]
  %s7 = inlined_call_operand.vmem [shape: f32[1,128], index: 7, kind: input, shape index: {}]
  %s8 = inlined_call_operand.vmem [shape: f32[8,256], index: 8, kind: output, shape index: {}]
  %s9 = sld [smem:[#allocation0]]
  $region50: #{_attention_forward.1} parent=0
    _
  %s11 = ssub.s32 1, %s9
  %s12 = scalar_select 0, %s11, %s9
  $region1: #{_attention_forward.1} parent=0
    #allocation2 [shape = 'u8[16384]{0}', space=vmem, size = 0x4000, scoped, tag = 'input window, operand 3, single buffered']
    #allocation3 [shape = 's32[1]{0}', space=sflag, size = 0x4, scoped, tag = 'scoped memory for _attention_forward.1']
    #allocation4 [shape = 'u8[32768]{0}', space=vmem, size = 0x8000, scoped, tag = 'input window, operand 4, single buffered']
    #allocation5 [shape = 's32[1]{0}', space=sflag, size = 0x4, scoped, tag = 'scoped memory for _attention_forward.1']
    %13 = vsyncpa [#allocation3], 0
    %14 = vsyncpa [#allocation5], 0
    // Predicated region
    $region2: #{_attention_forward.1} parent=1 // pred_check
      _
    $region3: #{_attention_forward.1} parent=1 // pred_check_branch
      %16 = sbr.rel (0) target = $region5
    $region4: #{_attention_forward.1} parent=1 // pred_region
      _
    $region5: #{_attention_forward.1} parent=1 // pred_fallthru
      _
    // Predicated region
    $region6: #{_attention_forward.1} parent=1 // pred_check
      _
    $region7: #{_attention_forward.1} parent=1 // pred_check_branch
      %18 = sbr.rel (0) target = $region9
    $region8: #{_attention_forward.1} parent=1 // pred_region
      _
    $region9: #{_attention_forward.1} parent=1 // pred_fallthru
      _
    // Predicated region
    $region10: #{_attention_forward.1} parent=1 // pred_check
      _
    $region11: #{_attention_forward.1} parent=1 // pred_check_branch
      %20 = sbr.rel (0) target = $region13
    $region12: #{_attention_forward.1} parent=1 // pred_region
      _
    $region13: #{_attention_forward.1} parent=1 // pred_fallthru
      _
    // Predicated region
    $region14: #{_attention_forward.1} parent=1 // pred_check
      _
    $region15: #{_attention_forward.1} parent=1 // pred_check_branch
      %22 = sbr.rel (0) target = $region17
    $region16: #{_attention_forward.1} parent=1 // pred_region
      %s24 = ssub.s32 512, 512
      %25 = vsyncadd [#allocation3], %s24
      %s26 = sshll.u32 [#allocation2], 4
      %s27 = int_to_ptr.vmem [resolvable:$true] %s26
      %32 = dma.hbm_to_vmem [thread:$0]  %s3, 512, %s27, [#allocation3], 128, 128, 8
    $region17: #{_attention_forward.1} parent=1 // pred_fallthru
      _
    // Predicated region
    $region18: #{_attention_forward.1} parent=1 // pred_check
      _
    $region19: #{_attention_forward.1} parent=1 // pred_check_branch
      %34 = sbr.rel (0) target = $region21
    $region20: #{_attention_forward.1} parent=1 // pred_region
      %s36 = ssub.s32 1024, 1024
      %37 = vsyncadd [#allocation5], %s36
      %s38 = sshll.u32 [#allocation4], 4
      %s39 = int_to_ptr.vmem [resolvable:$true] %s38
      %44 = dma.hbm_to_vmem [thread:$0]  %s4, 1024, %s39, [#allocation5], 128, 128, 8
    $region21: #{_attention_forward.1} parent=1 // pred_fallthru
      _
    // Predicated region
    $region22: #{_attention_forward.1} parent=1 // pred_check
      _
    $region23: #{_attention_forward.1} parent=1 // pred_check_branch
      %46 = sbr.rel (0) target = $region25
    $region24: #{_attention_forward.1} parent=1 // pred_region
      _
    $region25: #{_attention_forward.1} parent=1 // pred_fallthru
      _
    // Predicated region
    $region26: #{_attention_forward.1} parent=1 // pred_check
      _
    $region27: #{_attention_forward.1} parent=1 // pred_check_branch
      %48 = sbr.rel (0) target = $region29
    $region28: #{_attention_forward.1} parent=1 // pred_region
      _
    $region29: #{_attention_forward.1} parent=1 // pred_fallthru
      _
    // Predicated region
    $region30: #{_attention_forward.1} parent=1 // pred_check
      _
    $region31: #{_attention_forward.1} parent=1 // pred_check_branch
      %50 = sbr.rel (0) target = $region33
    $region32: #{_attention_forward.1} parent=1 // pred_region
      _
    $region33: #{_attention_forward.1} parent=1 // pred_fallthru
      _
    // Predicated region
    $region34: #{_attention_forward.1} parent=1 // pred_check
      _
    $region35: #{_attention_forward.1} parent=1 // pred_check_branch
      %52 = sbr.rel (0) target = $region37
    $region36: #{_attention_forward.1} parent=1 // pred_region
      %53 = dma.done [#allocation3], 512
    $region37: #{_attention_forward.1} parent=1 // pred_fallthru
      _
    // Predicated region
    $region38: #{_attention_forward.1} parent=1 // pred_check
      _
    $region39: #{_attention_forward.1} parent=1 // pred_check_branch
      %55 = sbr.rel (0) target = $region41
    $region40: #{_attention_forward.1} parent=1 // pred_region
      %56 = dma.done [#allocation5], 1024
    $region41: #{_attention_forward.1} parent=1 // pred_fallthru
      _
    %v57 = vld [vmem:[%s0] sm:$0xff]
    %v58 = vld [vmem:[#allocation2] sm:$0xff]
    %v59 = vld [vmem:[#allocation2 + $0x8] sm:$0xff]
    %v60 = vld [vmem:[#allocation2 + $0x10] sm:$0xff]
    %v61 = vld [vmem:[#allocation2 + $0x18] sm:$0xff]
    %v62 = vld [vmem:[%s1] sm:$0xff]
    %v63 = vld [vmem:[#allocation4] sm:$0xff]
    %v64 = vld [vmem:[#allocation4 + $0x8] sm:$0xff]
    %v65 = vld [vmem:[#allocation4 + $0x10] sm:$0xff]
    %v66 = vld [vmem:[#allocation4 + $0x18] sm:$0xff]
    %v67 = vld [vmem:[#allocation4 + $0x20] sm:$0xff]
    %v68 = vld [vmem:[#allocation4 + $0x28] sm:$0xff]
    %v69 = vld [vmem:[#allocation4 + $0x30] sm:$0xff]
    %v70 = vld [vmem:[#allocation4 + $0x38] sm:$0xff]
    %vm71 = vcmask 523264
    %v73 = vsel %vm71, %v62, 0
    %75 = vmatprep.subr.mxu0 0.0
    %76 = vmatpush1.msra.mxu0 %v63
    %77 = vmatprep.subr.mxu0 0.0
    %78 = vmatpush1.msra.mxu0 %v64
    %79 = vmatprep.subr.mxu0 0.0
    %80 = vmatpush1.msra.mxu0 %v65
    %81 = vmatprep.subr.mxu0 0.0
    %82 = vmatpush1.msra.mxu0 %v66
    %83 = vmatprep.subr.mxu0 0.0
    %84 = vmatpush1.msra.mxu0 %v67
    %85 = vmatprep.subr.mxu0 0.0
    %86 = vmatpush1.msra.mxu0 %v68
    %87 = vmatprep.subr.mxu0 0.0
    %88 = vmatpush1.msra.mxu0 %v69
    %89 = vmatprep.subr.mxu0 0.0
    %90 = vmatpush1.msra.mxu0 %v70
    %91 = vmatprep.subr.mxu0 0.0
    %92 = vmatpush1.msra.mxu0 0.0
    %93 = vmatprep.subr.mxu0 0.0
    %94 = vmatpush1.msra.mxu0 0.0
    %95 = vmatprep.subr.mxu0 0.0
    %96 = vmatpush1.msra.mxu0 0.0
    %97 = vmatprep.subr.mxu0 0.0
    %98 = vmatpush1.msra.mxu0 0.0
    %99 = vmatprep.subr.mxu0 0.0
    %100 = vmatpush1.msra.mxu0 0.0
    %101 = vmatprep.subr.mxu0 0.0
    %102 = vmatpush1.msra.mxu0 0.0
    %103 = vmatprep.subr.mxu0 0.0
    %104 = vmatpush1.msra.mxu0 0.0
    %105 = vmatprep.subr.mxu0 0.0
    %106 = vmatpush1.msra.mxu0 0.0
    %107 = vmatprep.subr.mxu0 0.0
    %108 = vmatpush1.msra.mxu0 0.0
    %109 = vmatprep.subr.mxu0 0.0
    %110 = vmatpush1.msra.mxu0 0.0
    %111 = vmatprep.subr.mxu0 0.0
    %112 = vmatpush1.msra.mxu0 0.0
    %113 = vmatprep.subr.mxu0 0.0
    %114 = vmatpush1.msra.mxu0 0.0
    %115 = vmatprep.subr.mxu0 0.0
    %116 = vmatpush1.msra.mxu0 0.0
    %117 = vmatprep.subr.mxu0 0.0
    %118 = vmatpush1.msra.mxu0 0.0
    %119 = vmatprep.subr.mxu0 0.0
    %120 = vmatpush1.msra.mxu0 0.0
    %121 = vmatprep.subr.mxu0 0.0
    %122 = vmatpush1.msra.mxu0 0.0
    %123 = vmatprep.subr.mxu0 0.0
    %124 = vmatpush1.msra.mxu0 0.0
    %125 = vmatprep.subr.mxu0 0.0
    %126 = vmatpush1.msra.mxu0 0.0
    %127 = vmatprep.subr.mxu0 0.0
    %128 = vmatpush1.msra.mxu0 0.0
    %129 = vmatprep.subr.mxu0 0.0
    %130 = vmatpush1.msra.mxu0 0.0
    %131 = vmatprep.subr.mxu0 0.0
    %132 = vmatpush1.msra.mxu0 0.0
    %133 = vmatprep.subr.mxu0 0.0
    %134 = vmatpush1.msra.mxu0 0.0
    %135 = vmatprep.subr.mxu0 0.0
    %136 = vmatpush1.msra.mxu0 0.0
    %137 = vmatprep.subr.mxu0 0.0
    %138 = vmatpush1.msra.mxu0 0.0
    %139 = vmatprep.mubr.f32.mxu0 0.0
    %140 = vmatmul.mubr.f32.gmra.mrb[0].mxu0 %v73
    %v141 = vpop.f32.mrb[0].mxu0
    %v142 = vadd.f32 0.0, %v141
    %v143 = vpop.f32.mrb[0].mxu0
    %144 = vdwg.mxu0
    %vm145 = vcmask 261120
    %v147 = vsel %vm145, %v57, 0
    %149 = vmatprep.subr.mxu0 0.0
    %150 = vmatpush1.msra.mxu0 %v58
    %151 = vmatprep.subr.mxu0 0.0
    %152 = vmatpush1.msra.mxu0 %v59
    %153 = vmatprep.subr.mxu0 0.0
    %154 = vmatpush1.msra.mxu0 %v60
    %155 = vmatprep.subr.mxu0 0.0
    %156 = vmatpush1.msra.mxu0 %v61
    %157 = vmatprep.subr.mxu0 0.0
    %158 = vmatpush1.msra.mxu0 0.0
    %159 = vmatprep.subr.mxu0 0.0
    %160 = vmatpush1.msra.mxu0 0.0
    %161 = vmatprep.subr.mxu0 0.0
    %162 = vmatpush1.msra.mxu0 0.0
    %163 = vmatprep.subr.mxu0 0.0
    %164 = vmatpush1.msra.mxu0 0.0
    %165 = vmatprep.subr.mxu0 0.0
    %166 = vmatpush1.msra.mxu0 0.0
    %167 = vmatprep.subr.mxu0 0.0
    %168 = vmatpush1.msra.mxu0 0.0
    %169 = vmatprep.subr.mxu0 0.0
    %170 = vmatpush1.msra.mxu0 0.0
    %171 = vmatprep.subr.mxu0 0.0
    %172 = vmatpush1.msra.mxu0 0.0
    %173 = vmatprep.subr.mxu0 0.0
    %174 = vmatpush1.msra.mxu0 0.0
    %175 = vmatprep.subr.mxu0 0.0
    %176 = vmatpush1.msra.mxu0 0.0
    %177 = vmatprep.subr.mxu0 0.0
    %178 = vmatpush1.msra.mxu0 0.0
    %179 = vmatprep.subr.mxu0 0.0
    %180 = vmatpush1.msra.mxu0 0.0
    %181 = vmatprep.subr.mxu0 0.0
    %182 = vmatpush1.msra.mxu0 0.0
    %183 = vmatprep.subr.mxu0 0.0
    %184 = vmatpush1.msra.mxu0 0.0
    %185 = vmatprep.subr.mxu0 0.0
    %186 = vmatpush1.msra.mxu0 0.0
    %187 = vmatprep.subr.mxu0 0.0
    %188 = vmatpush1.msra.mxu0 0.0
    %189 = vmatprep.subr.mxu0 0.0
    %190 = vmatpush1.msra.mxu0 0.0
    %191 = vmatprep.subr.mxu0 0.0
    %192 = vmatpush1.msra.mxu0 0.0
    %193 = vmatprep.subr.mxu0 0.0
    %194 = vmatpush1.msra.mxu0 0.0
    %195 = vmatprep.subr.mxu0 0.0
    %196 = vmatpush1.msra.mxu0 0.0
    %197 = vmatprep.subr.mxu0 0.0
    %198 = vmatpush1.msra.mxu0 0.0
    %199 = vmatprep.subr.mxu0 0.0
    %200 = vmatpush1.msra.mxu0 0.0
    %201 = vmatprep.subr.mxu0 0.0
    %202 = vmatpush1.msra.mxu0 0.0
    %203 = vmatprep.subr.mxu0 0.0
    %204 = vmatpush1.msra.mxu0 0.0
    %205 = vmatprep.subr.mxu0 0.0
    %206 = vmatpush1.msra.mxu0 0.0
    %207 = vmatprep.subr.mxu0 0.0
    %208 = vmatpush1.msra.mxu0 0.0
    %209 = vmatprep.subr.mxu0 0.0
    %210 = vmatpush1.msra.mxu0 0.0
    %211 = vmatprep.subr.mxu0 0.0
    %212 = vmatpush1.msra.mxu0 0.0
    %213 = vmatprep.mubr.f32.mxu0 0.0
    %214 = vmatmul.mubr.f32.gmra.mrb[0].mxu0 %v147
    %v215 = vpop.f32.mrb[0].mxu0
    %v216 = vadd.f32 %v142, %v215
    %v217 = vpop.f32.mrb[0].mxu0
    %218 = vdwg.mxu0
    %v219 = vld [vmem:[%s5] sm:$0x1]
    %v221 = vlaneseq
    %v222 = vshrl.u32 %v221, 7
    %v223 = vsub.s32 0, %v222
    %v224 = vrot.slane %v219, %v223
    %v226 = vadd.f32 %v216, %v224
    %v227 = vtanh.pop %v226
    %v228 = vld [vmem:[%s6] sm:$0xff]
    %v229 = vld [vmem:[%s6 + $0x8] sm:$0xff]
    %v230 = vld [vmem:[%s6 + $0x10] sm:$0xff]
    %v231 = vld [vmem:[%s6 + $0x18] sm:$0xff]
    %v232 = vld [vmem:[%s6 + $0x20] sm:$0xff]
    %v233 = vld [vmem:[%s6 + $0x28] sm:$0xff]
    %v234 = vld [vmem:[%s6 + $0x30] sm:$0xff]
    %v235 = vld [vmem:[%s6 + $0x38] sm:$0xff]
    %v236 = vld [vmem:[%s6 + $0x40] sm:$0xff]
    %v237 = vld [vmem:[%s6 + $0x48] sm:$0xff]
    %v238 = vld [vmem:[%s6 + $0x50] sm:$0xff]
    %v239 = vld [vmem:[%s6 + $0x58] sm:$0xff]
    %v240 = vld [vmem:[%s6 + $0x60] sm:$0xff]
    %v241 = vld [vmem:[%s6 + $0x68] sm:$0xff]
    %v242 = vld [vmem:[%s6 + $0x70] sm:$0xff]
    %v243 = vld [vmem:[%s6 + $0x78] sm:$0xff]
    %v244 = vld [vmem:[%s7] sm:$0x1]
    %v246 = vlaneseq
    %v247 = vshrl.u32 %v246, 7
    %v248 = vsub.s32 0, %v247
    %v249 = vrot.slane %v244, %v248
    %251 = vmatprep.subr.mxu0 0.0
    %252 = vmatpush1.msra.mxu0 %v228
    %253 = vmatprep.subr.mxu0 0.0
    %254 = vmatpush1.msra.mxu0 %v229
    %255 = vmatprep.subr.mxu0 0.0
    %256 = vmatpush1.msra.mxu0 %v230
    %257 = vmatprep.subr.mxu0 0.0
    %258 = vmatpush1.msra.mxu0 %v231
    %259 = vmatprep.subr.mxu0 0.0
    %260 = vmatpush1.msra.mxu0 %v232
    %261 = vmatprep.subr.mxu0 0.0
    %262 = vmatpush1.msra.mxu0 %v233
    %263 = vmatprep.subr.mxu0 0.0
    %264 = vmatpush1.msra.mxu0 %v234
    %265 = vmatprep.subr.mxu0 0.0
    %266 = vmatpush1.msra.mxu0 %v235
    %267 = vmatprep.subr.mxu0 0.0
    %268 = vmatpush1.msra.mxu0 %v236
    %269 = vmatprep.subr.mxu0 0.0
    %270 = vmatpush1.msra.mxu0 %v237
    %271 = vmatprep.subr.mxu0 0.0
    %272 = vmatpush1.msra.mxu0 %v238
    %273 = vmatprep.subr.mxu0 0.0
    %274 = vmatpush1.msra.mxu0 %v239
    %275 = vmatprep.subr.mxu0 0.0
    %276 = vmatpush1.msra.mxu0 %v240
    %277 = vmatprep.subr.mxu0 0.0
    %278 = vmatpush1.msra.mxu0 %v241
    %279 = vmatprep.subr.mxu0 0.0
    %280 = vmatpush1.msra.mxu0 %v242
    %281 = vmatprep.subr.mxu0 0.0
    %282 = vmatpush1.msra.mxu0 %v243
    %283 = vmatprep.subr.mxu0 0.0
    %284 = vmatpush1.msra.mxu0 0.0
    %285 = vmatprep.subr.mxu0 0.0
    %286 = vmatpush1.msra.mxu0 0.0
    %287 = vmatprep.subr.mxu0 0.0
    %288 = vmatpush1.msra.mxu0 0.0
    %289 = vmatprep.subr.mxu0 0.0
    %290 = vmatpush1.msra.mxu0 0.0
    %291 = vmatprep.subr.mxu0 0.0
    %292 = vmatpush1.msra.mxu0 0.0
    %293 = vmatprep.subr.mxu0 0.0
    %294 = vmatpush1.msra.mxu0 0.0
    %295 = vmatprep.subr.mxu0 0.0
    %296 = vmatpush1.msra.mxu0 0.0
    %297 = vmatprep.subr.mxu0 0.0
    %298 = vmatpush1.msra.mxu0 0.0
    %299 = vmatprep.subr.mxu0 0.0
    %300 = vmatpush1.msra.mxu0 0.0
    %301 = vmatprep.subr.mxu0 0.0
    %302 = vmatpush1.msra.mxu0 0.0
    %303 = vmatprep.subr.mxu0 0.0
    %304 = vmatpush1.msra.mxu0 0.0
    %305 = vmatprep.subr.mxu0 0.0
    %306 = vmatpush1.msra.mxu0 0.0
    %307 = vmatprep.subr.mxu0 0.0
    %308 = vmatpush1.msra.mxu0 0.0
    %309 = vmatprep.subr.mxu0 0.0
    %310 = vmatpush1.msra.mxu0 0.0
    %311 = vmatprep.subr.mxu0 0.0
    %312 = vmatpush1.msra.mxu0 0.0
    %313 = vmatprep.subr.mxu0 0.0
    %314 = vmatpush1.msra.mxu0 0.0
    %315 = vmatprep.mubr.f32.mxu0 0.0
    %316 = vmatmul.mubr.f32.gmra.mrb[0].mxu0 %v227
    %v317 = vpop.f32.mrb[0].mxu0
    %v318 = vadd.f32 %v249, %v317
    %v319 = vpop.f32.mrb[0].mxu0
    %320 = vdwg.mxu0
    %321 = vmax.xlane.f32.xlu0 %v318
    %v322 = vpop.xlane.xlu0 %321
    %v323 = vsub.f32 %v318, %v322
    %v324 = vmul.f32 %v323, 1.442695
    %v325 = vpow.pop %v324
    %326 = vadd.xlane.f32.xlu0 %v325
    %v327 = vpop.xlane.xlu0 %326
    %v328 = vrcp.pop %v327
    %v329 = vmul.f32 %v325, %v328
    %v330 = vld [vmem:[%s2] sm:$0xff]
    %v331 = vld [vmem:[%s2 + $0x8] sm:$0xff]
    %v332 = vld [vmem:[%s2 + $0x10] sm:$0xff]
    %v333 = vld [vmem:[%s2 + $0x18] sm:$0xff]
    %v334 = vld [vmem:[%s2 + $0x20] sm:$0xff]
    %v335 = vld [vmem:[%s2 + $0x28] sm:$0xff]
    %v336 = vld [vmem:[%s2 + $0x30] sm:$0xff]
    %v337 = vld [vmem:[%s2 + $0x38] sm:$0xff]
    %v338 = vld [vmem:[%s2 + $0x40] sm:$0xff]
    %v339 = vld [vmem:[%s2 + $0x48] sm:$0xff]
    %v340 = vld [vmem:[%s2 + $0x50] sm:$0xff]
    %v341 = vld [vmem:[%s2 + $0x58] sm:$0xff]
    %v342 = vld [vmem:[%s2 + $0x60] sm:$0xff]
    %v343 = vld [vmem:[%s2 + $0x68] sm:$0xff]
    %v344 = vld [vmem:[%s2 + $0x70] sm:$0xff]
    %v345 = vld [vmem:[%s2 + $0x78] sm:$0xff]
    %346 = vmatprep.subr.mxu0 0.0
    %347 = vmatpush1.msra.mxu0 %v330
    %348 = vmatprep.subr.mxu0 0.0
    %349 = vmatpush1.msra.mxu0 %v331
    %350 = vmatprep.subr.mxu0 0.0
    %351 = vmatpush1.msra.mxu0 %v332
    %352 = vmatprep.subr.mxu0 0.0
    %353 = vmatpush1.msra.mxu0 %v333
    %354 = vmatprep.subr.mxu0 0.0
    %355 = vmatpush1.msra.mxu0 %v334
    %356 = vmatprep.subr.mxu0 0.0
    %357 = vmatpush1.msra.mxu0 %v335
    %358 = vmatprep.subr.mxu0 0.0
    %359 = vmatpush1.msra.mxu0 %v336
    %360 = vmatprep.subr.mxu0 0.0
    %361 = vmatpush1.msra.mxu0 %v337
    %362 = vmatprep.subr.mxu0 0.0
    %363 = vmatpush1.msra.mxu0 %v338
    %364 = vmatprep.subr.mxu0 0.0
    %365 = vmatpush1.msra.mxu0 %v339
    %366 = vmatprep.subr.mxu0 0.0
    %367 = vmatpush1.msra.mxu0 %v340
    %368 = vmatprep.subr.mxu0 0.0
    %369 = vmatpush1.msra.mxu0 %v341
    %370 = vmatprep.subr.mxu0 0.0
    %371 = vmatpush1.msra.mxu0 %v342
    %372 = vmatprep.subr.mxu0 0.0
    %373 = vmatpush1.msra.mxu0 %v343
    %374 = vmatprep.subr.mxu0 0.0
    %375 = vmatpush1.msra.mxu0 %v344
    %376 = vmatprep.subr.mxu0 0.0
    %377 = vmatpush1.msra.mxu0 %v345
    %378 = vmatprep.subr.mxu0 0.0
    %379 = vmatpush1.msra.mxu0 0.0
    %380 = vmatprep.subr.mxu0 0.0
    %381 = vmatpush1.msra.mxu0 0.0
    %382 = vmatprep.subr.mxu0 0.0
    %383 = vmatpush1.msra.mxu0 0.0
    %384 = vmatprep.subr.mxu0 0.0
    %385 = vmatpush1.msra.mxu0 0.0
    %386 = vmatprep.subr.mxu0 0.0
    %387 = vmatpush1.msra.mxu0 0.0
    %388 = vmatprep.subr.mxu0 0.0
    %389 = vmatpush1.msra.mxu0 0.0
    %390 = vmatprep.subr.mxu0 0.0
    %391 = vmatpush1.msra.mxu0 0.0
    %392 = vmatprep.subr.mxu0 0.0
    %393 = vmatpush1.msra.mxu0 0.0
    %394 = vmatprep.subr.mxu0 0.0
    %395 = vmatpush1.msra.mxu0 0.0
    %396 = vmatprep.subr.mxu0 0.0
    %397 = vmatpush1.msra.mxu0 0.0
    %398 = vmatprep.subr.mxu0 0.0
    %399 = vmatpush1.msra.mxu0 0.0
    %400 = vmatprep.subr.mxu0 0.0
    %401 = vmatpush1.msra.mxu0 0.0
    %402 = vmatprep.subr.mxu0 0.0
    %403 = vmatpush1.msra.mxu0 0.0
    %404 = vmatprep.subr.mxu0 0.0
    %405 = vmatpush1.msra.mxu0 0.0
    %406 = vmatprep.subr.mxu0 0.0
    %407 = vmatpush1.msra.mxu0 0.0
    %408 = vmatprep.subr.mxu0 0.0
    %409 = vmatpush1.msra.mxu0 0.0
    %410 = vmatprep.mubr.f32.mxu0 0.0
    %411 = vmatmul.mubr.f32.gmra.mrb[0].mxu0 %v329
    %v412 = vpop.f32.mrb[0].mxu0
    %v413 = vadd.f32 0.0, %v412
    %v414 = vpop.f32.mrb[0].mxu0
    %415 = vdwg.mxu0
    %416 = vst [vmem:[%s8] sm:$0xff] %v329
    %417 = vst [vmem:[%s8 + $0x8] sm:$0xff] %v413
    // Predicated region
    $region42: #{_attention_forward.1} parent=1 // pred_check
      _
    $region43: #{_attention_forward.1} parent=1 // pred_check_branch
      %419 = sbr.rel (0) target = $region45
    $region44: #{_attention_forward.1} parent=1 // pred_region
      _
    $region45: #{_attention_forward.1} parent=1 // pred_fallthru
      _
    // Predicated region
    $region46: #{_attention_forward.1} parent=1 // pred_check
      _
    $region47: #{_attention_forward.1} parent=1 // pred_check_branch
      %421 = sbr.rel (0) target = $region49
    $region48: #{_attention_forward.1} parent=1 // pred_region
      _
    $region49: #{_attention_forward.1} parent=1 // pred_fallthru
      _
    %422 = vsyncpa [#allocation3], 1
    %423 = vsyncpa [#allocation5], 1

</llo_original>
